<compile_context>
chip_gen: v7x
topology: tpu7x:2x2x1
jax: 0.10.0
libtpu: 0.0.40
codegen_flags: <defaults>
</compile_context>

<pallas_src>
import functools

import jax
import jax.numpy as jnp
from jax.experimental import pallas as pl
from jax.experimental.pallas import tpu as pltpu


def _row_score(pred, obs, n_member):
    """Per-feature CRPS for one batch row: pred (M, TF) f32, obs (1, TF) f32 -> (1, TF).

    Energy form: shifts k and M-k contribute identically, so only k=1..M//2 are
    evaluated (middle shift weighted 1/2 when M is even).  Abs-diffs accumulate
    element-wise (VPU); exactly one cross-sublane reduce at the end (XLU);
    scalar factors folded into one fused scale.
    """
    # TODO(synk): for bf16 inputs on v6e/v7x keep the abs-diff work in bf16 with
    # an f32 accumulator (needs validation of packed-sublane bf16 roll).
    # TODO(synk): for very large ensembles (M >~ 32) switch to the rank-based
    # form via a bitonic network / lax.fori_loop to bound unroll and vreg pressure.
    M = n_member
    half = M // 2
    acc = None
    for k in range(1, half + 1):
        d = jnp.abs(pred - pltpu.roll(pred, shift=k, axis=0))   # roll: XLU slot, rest: VPU
        if M % 2 == 0 and k == half:
            d = 0.5 * d                                          # middle shift counts once
        acc = d if acc is None else acc + d
    per_member = jnp.abs(pred - obs)                             # (M, TF)
    if acc is not None:
        per_member = per_member - acc * (1.0 / float(M))
    # single sublane (member-axis) reduction + one final scale
    return jnp.sum(per_member, axis=0, keepdims=True) * (1.0 / float(M))


def _crps_score_kernel(obs_ref, pred_ref, out_ref, *, n_member, n_rows):
    # obs_ref: (TB,1,TF), pred_ref: (TB,M,TF), out_ref: (TB,1,TF) f32
    for t in range(n_rows):
        pred = pred_ref[t].astype(jnp.float32)
        obs = obs_ref[t].astype(jnp.float32)
        out_ref[t] = _row_score(pred, obs, n_member)


def _crps_partial_kernel(obs_ref, pred_ref, out_ref, *,
                         n_member, n_rows, tile_f, total_f):
    # Emits NaN/OOB-masked (sum, valid_count) partials for this grid step instead
    # of the full per-feature score -> skips the (B, F) f32 HBM writeback.
    col0 = pl.program_id(1) * tile_f
    lane = jax.lax.broadcasted_iota(jnp.int32, (1, tile_f), 1)
    in_bounds = (col0 + lane) < total_f          # masks OOB lanes of a ragged edge block
    tot = jnp.float32(0.0)
    cnt = jnp.float32(0.0)
    for t in range(n_rows):
        pred = pred_ref[t].astype(jnp.float32)
        obs = obs_ref[t].astype(jnp.float32)
        score = _row_score(pred, obs, n_member)                  # (1, TF)
        valid = in_bounds & jnp.logical_not(jnp.isnan(score))    # nanmean/nansum semantics
        tot = tot + jnp.sum(jnp.where(valid, score, 0.0))
        cnt = cnt + jnp.sum(valid.astype(jnp.float32))
    sub = jax.lax.broadcasted_iota(jnp.int32, (8, 128), 0)
    ln = jax.lax.broadcasted_iota(jnp.int32, (8, 128), 1)
    out_ref[0, 0] = jnp.where((sub == 0) & (ln == 0), tot,
                              jnp.where((sub == 0) & (ln == 1), cnt, 0.0))


def _choose_tf(F: int, M: int, in_isize: int, reduction: str) -> int:
    """Largest lane-aligned feature tile keeping (double-buffered inputs +
    double-buffered output + ~4 in-kernel (M,tf) f32 temporaries) within a
    conservative budget that fits every generation's scoped VMEM."""
    out_lane = 2 * 4 if reduction == "none" else 0   # f32 output dbuf bytes / lane
    temps_lane = 4 * M * 4                           # f32 pred copy/shifted/absdiff/acc
    per_lane = 2 * (M + 1) * max(in_isize, 1) + out_lane + temps_lane
    budget = 12 * 1024 * 1024
    cap = max(128, (budget // per_lane) // 128 * 128)
    return F if F <= cap else cap


def _choose_tb(B: int, M: int, tf: int, in_isize: int, n_fblocks: int) -> int:
    """Block several batch rows per grid step when each step would be tiny
    (amortizes per-grid-step overhead), keeping >=2 grid steps when possible
    so both v7x TensorCores get work."""
    if M > 16:
        return 1
    tb = 1
    for cand in (16, 8, 4, 2):
        if B % cand == 0 and cand * M * tf * max(in_isize, 4) <= (1 << 20):
            tb = cand
            break
    while tb > 1 and (B // tb) * n_fblocks < 2:
        tb //= 2
    return tb


def empirical_crps(observation, prediction, reduction: str = "mean", tf: int | None = None):
    """observation: (B, 1, *feat), prediction: (B, M, *feat); member axis = 1."""
    if reduction not in ("mean", "sum", "none"):
        raise NotImplementedError(f"Reduction {reduction} not implemented")
    B, M = prediction.shape[0], prediction.shape[1]
    assert observation.shape[0] == B and observation.shape[1] == 1
    feat_shape = prediction.shape[2:]
    F = 1
    for d in feat_shape:
        F *= int(d)

    # Native-dtype reshapes only; no wrapper-side pad/cast (no extra HBM pass).
    obs3 = observation.reshape(B, 1, F)
    pred3 = prediction.reshape(B, M, F)

    in_isize = jnp.dtype(prediction.dtype).itemsize
    if tf is None:
        tf = _choose_tf(F, M, in_isize, reduction)
    if tf != F and tf % 128 != 0:
        raise ValueError("tf must be a multiple of 128 (or equal to the feature size)")

    n_fblocks = (F + tf - 1) // tf
    tb = _choose_tb(B, M, tf, in_isize, n_fblocks)
    grid = (B // tb, n_fblocks)

    # Generation-aware VMEM limit (v7x: 64 MiB physical vs 128 MiB on v5e/v6e).
    try:
        info = pltpu.get_tpu_info()
        vmem_cap = int(getattr(info, "vmem_capacity_bytes", 64 * 1024 * 1024))
    except Exception:
        vmem_cap = 64 * 1024 * 1024
    vmem_limit = max(16 * 1024 * 1024, min(vmem_cap // 2, 48 * 1024 * 1024))
    cparams = pltpu.CompilerParams(
        dimension_semantics=("parallel", "parallel"),
        vmem_limit_bytes=int(vmem_limit),
    )

    in_specs = [
        pl.BlockSpec((tb, 1, tf), lambda b, f: (b, 0, f)),   # observation
        pl.BlockSpec((tb, M, tf), lambda b, f: (b, 0, f)),   # prediction
    ]

    if reduction == "none":
        kernel = functools.partial(_crps_score_kernel, n_member=M, n_rows=tb)
        score3 = pl.pallas_call(
            kernel,
            out_shape=jax.ShapeDtypeStruct((B, 1, F), jnp.float32),
            grid=grid,
            in_specs=in_specs,
            out_specs=pl.BlockSpec((tb, 1, tf), lambda b, f: (b, 0, f)),
            compiler_params=cparams,
        )(obs3, pred3)
        return score3[:, 0, :].reshape((B,) + feat_shape)

    # mean / sum: tiny lane-dense per-block (sum, count) partials + XLA reduce.
    kernel = functools.partial(_crps_partial_kernel, n_member=M, n_rows=tb,
                               tile_f=tf, total_f=F)
    partials = pl.pallas_call(
        kernel,
        out_shape=jax.ShapeDtypeStruct((B // tb, n_fblocks, 8, 128), jnp.float32),
        grid=grid,
        in_specs=in_specs,
        out_specs=pl.BlockSpec((1, 1, 8, 128), lambda b, f: (b, f, 0, 0)),
        compiler_params=cparams,
    )(obs3, pred3)
    total = jnp.sum(partials[:, :, 0, 0])
    if reduction == "sum":
        return total
    count = jnp.sum(partials[:, :, 0, 1])
    return total / count   # nanmean; all-NaN -> 0/0 = NaN, matching torch


def _reference_score(observation, prediction):
    """Pure-JAX per-feature CRPS mirroring the PyTorch forward (dim=1)."""
    M = prediction.shape[1]
    abs_err = jnp.mean(jnp.abs(prediction - observation), axis=1)
    ps = jnp.sort(prediction, axis=1)
    diff = jnp.diff(ps, axis=1)
    w = (jnp.arange(1, M, dtype=jnp.float32)
         * jnp.arange(M - 1, 0, -1, dtype=jnp.float32))
    w = w.reshape((1, M - 1) + (1,) * (prediction.ndim - 2))
    return abs_err - jnp.sum(diff * w, axis=1) / float(M * M)


if __name__ == "__main__":
    key = jax.random.PRNGKey(0)
    k_obs, k_pred, k_obs2, k_pred2 = jax.random.split(key, 4)

    # Base case.
    B, M, H, W = 2, 8, 16, 16
    observation = jax.random.normal(k_obs, (B, 1, H, W), dtype=jnp.float32)
    prediction = jax.random.normal(k_pred, (B, M, H, W), dtype=jnp.float32)
    ref_score = _reference_score(observation, prediction)

    out_mean = jax.block_until_ready(empirical_crps(observation, prediction, "mean"))
    assert jnp.allclose(out_mean, jnp.nanmean(ref_score), rtol=1e-5, atol=1e-5), out_mean

    out_sum = jax.block_until_ready(empirical_crps(observation, prediction, "sum"))
    assert jnp.allclose(out_sum, jnp.nansum(ref_score), rtol=1e-4, atol=1e-4), out_sum

    out_none = jax.block_until_ready(empirical_crps(observation, prediction, "none"))
    assert out_none.shape == (B, H, W)
    assert jnp.allclose(out_none, ref_score, rtol=1e-5, atol=1e-5)

    # NaN handling (nanmean skips NaN-scored features, like the PyTorch module).
    pred_nan = prediction.at[0, 3, 2, 5].set(jnp.nan)
    ref_nan = jnp.nanmean(_reference_score(observation, pred_nan))
    out_nan = jax.block_until_ready(empirical_crps(observation, pred_nan, "mean"))
    assert jnp.allclose(out_nan, ref_nan, rtol=1e-5, atol=1e-5), (out_nan, ref_nan)

    # Ragged feature tail (F=272 with tf=128) exercises the no-pad partial-block path.
    H2, W2 = 4, 68
    obs_r = jax.random.normal(k_obs2, (B, 1, H2, W2), dtype=jnp.float32)
    pred_r = jax.random.normal(k_pred2, (B, M, H2, W2), dtype=jnp.float32)
    ref_r = _reference_score(obs_r, pred_r)
    out_r_mean = jax.block_until_ready(empirical_crps(obs_r, pred_r, "mean", tf=128))
    assert jnp.allclose(out_r_mean, jnp.nanmean(ref_r), rtol=1e-5, atol=1e-5)
    out_r_none = jax.block_until_ready(empirical_crps(obs_r, pred_r, "none", tf=128))
    assert jnp.allclose(out_r_none, ref_r, rtol=1e-5, atol=1e-5)

    print("KERNEL_OK")
</pallas_src>

<mosaic_0001>
module attributes {stable_mosaic.version = 11 : i64} {
  func.func @_crps_partial_kernel(%arg0: i32, %arg1: i32, %arg2: memref<1x1x256xf32, #tpu.memory_space<vmem>>, %arg3: memref<1x8x256xf32, #tpu.memory_space<vmem>>, %arg4: memref<1x1x8x128xf32, #tpu.memory_space<vmem>>) attributes {dimension_semantics = [#tpu.dimension_semantics<parallel>, #tpu.dimension_semantics<parallel>], iteration_bounds = array<i64: 2, 1>, scalar_prefetch = 0 : i64, scratch_operands = 0 : i64, tpu.core_type = #tpu.core_type<tc>, window_params = [{transform_indices = @transform_0, window_bounds = array<i64: 1, 1, 256>}, {transform_indices = @transform_1, window_bounds = array<i64: 1, 8, 256>}, {transform_indices = @transform_2, window_bounds = array<i64: 1, 1, 8, 128>}]} {
    %c256_i32 = arith.constant 256 : i32
    %0 = arith.muli %arg1, %c256_i32 : i32
    %1 = tpu.iota {dimensions = array<i32: 1>} : vector<1x256xi32>
    %2 = vector.broadcast %0 : i32 to vector<1x256xi32>
    %3 = arith.addi %2, %1 : vector<1x256xi32>
    %c256_i32_0 = arith.constant 256 : i32
    %4 = vector.broadcast %c256_i32_0 : i32 to vector<1x256xi32>
    %5 = arith.cmpi slt, %3, %4 : vector<1x256xi32>
    %c0 = arith.constant 0 : index
    %c0_1 = arith.constant 0 : index
    %c0_2 = arith.constant 0 : index
    %6 = vector.load %arg3[%c0, %c0_1, %c0_2] : memref<1x8x256xf32, #tpu.memory_space<vmem>>, vector<1x8x256xf32>
    %7 = vector.shape_cast %6 : vector<1x8x256xf32> to vector<8x256xf32>
    %c0_3 = arith.constant 0 : index
    %c0_4 = arith.constant 0 : index
    %c0_5 = arith.constant 0 : index
    %8 = vector.load %arg2[%c0_3, %c0_4, %c0_5] : memref<1x1x256xf32, #tpu.memory_space<vmem>>, vector<1x1x256xf32>
    %9 = vector.shape_cast %8 : vector<1x1x256xf32> to vector<1x256xf32>
    %c1_i32 = arith.constant 1 : i32
    %10 = tpu.dynamic_rotate %7 by %c1_i32 dim 0 : vector<8x256xf32>, i32 -> vector<8x256xf32>
    %11 = arith.subf %7, %10 : vector<8x256xf32>
    %12 = math.absf %11 : vector<8x256xf32>
    %c2_i32 = arith.constant 2 : i32
    %13 = tpu.dynamic_rotate %7 by %c2_i32 dim 0 : vector<8x256xf32>, i32 -> vector<8x256xf32>
    %14 = arith.subf %7, %13 : vector<8x256xf32>
    %15 = math.absf %14 : vector<8x256xf32>
    %16 = arith.addf %12, %15 : vector<8x256xf32>
    %c3_i32 = arith.constant 3 : i32
    %17 = tpu.dynamic_rotate %7 by %c3_i32 dim 0 : vector<8x256xf32>, i32 -> vector<8x256xf32>
    %18 = arith.subf %7, %17 : vector<8x256xf32>
    %19 = math.absf %18 : vector<8x256xf32>
    %20 = arith.addf %16, %19 : vector<8x256xf32>
    %c4_i32 = arith.constant 4 : i32
    %21 = tpu.dynamic_rotate %7 by %c4_i32 dim 0 : vector<8x256xf32>, i32 -> vector<8x256xf32>
    %22 = arith.subf %7, %21 : vector<8x256xf32>
    %23 = math.absf %22 : vector<8x256xf32>
    %cst = arith.constant 5.000000e-01 : f32
    %24 = vector.broadcast %cst : f32 to vector<8x256xf32>
    %25 = arith.mulf %24, %23 : vector<8x256xf32>
    %26 = arith.addf %20, %25 : vector<8x256xf32>
    %27 = vector.broadcast %9 : vector<1x256xf32> to vector<8x256xf32>
    %28 = arith.subf %7, %27 : vector<8x256xf32>
    %29 = math.absf %28 : vector<8x256xf32>
    %cst_6 = arith.constant 1.250000e-01 : f32
    %30 = vector.broadcast %cst_6 : f32 to vector<8x256xf32>
    %31 = arith.mulf %26, %30 : vector<8x256xf32>
    %32 = arith.subf %29, %31 : vector<8x256xf32>
    %cst_7 = arith.constant dense<0.000000e+00> : vector<256xf32>
    %33 = vector.multi_reduction <add>, %32, %cst_7 [0] : vector<8x256xf32> to vector<256xf32>
    %34 = vector.shape_cast %33 : vector<256xf32> to vector<1x256xf32>
    %cst_8 = arith.constant 1.250000e-01 : f32
    %35 = vector.broadcast %cst_8 : f32 to vector<1x256xf32>
    %36 = arith.mulf %34, %35 : vector<1x256xf32>
    %37 = arith.cmpf one, %36, %36 : vector<1x256xf32>
    %cst_9 = arith.constant dense<true> : vector<1x256xi1>
    %38 = arith.xori %37, %cst_9 : vector<1x256xi1>
    %39 = arith.andi %5, %38 : vector<1x256xi1>
    %cst_10 = arith.constant 0.000000e+00 : f32
    %40 = vector.broadcast %cst_10 : f32 to vector<1x256xf32>
    %41 = arith.select %39, %36, %40 : vector<1x256xi1>, vector<1x256xf32>
    %42 = vector.shape_cast %41 : vector<1x256xf32> to vector<1x1x256xf32>
    %cst_11 = arith.constant dense<0.000000e+00> : vector<1xf32>
    %43 = vector.multi_reduction <add>, %42, %cst_11 [1, 2] : vector<1x1x256xf32> to vector<1xf32>
    %44 = vector.shape_cast %43 : vector<1xf32> to vector<1x1x1xf32>
    %45 = vector.extract %44[0, 0, 0] : f32 from vector<1x1x1xf32>
    %cst_12 = arith.constant 0.000000e+00 : f32
    %46 = arith.addf %cst_12, %45 : f32
    %47 = arith.extui %39 : vector<1x256xi1> to vector<1x256xi32>
    %48 = arith.sitofp %47 : vector<1x256xi32> to vector<1x256xf32>
    %49 = vector.shape_cast %48 : vector<1x256xf32> to vector<1x1x256xf32>
    %cst_13 = arith.constant dense<0.000000e+00> : vector<1xf32>
    %50 = vector.multi_reduction <add>, %49, %cst_13 [1, 2] : vector<1x1x256xf32> to vector<1xf32>
    %51 = vector.shape_cast %50 : vector<1xf32> to vector<1x1x1xf32>
    %52 = vector.extract %51[0, 0, 0] : f32 from vector<1x1x1xf32>
    %cst_14 = arith.constant 0.000000e+00 : f32
    %53 = arith.addf %cst_14, %52 : f32
    %54 = tpu.iota {dimensions = array<i32: 0>} : vector<8x128xi32>
    %55 = tpu.iota {dimensions = array<i32: 1>} : vector<8x128xi32>
    %c0_i32 = arith.constant 0 : i32
    %56 = vector.broadcast %c0_i32 : i32 to vector<8x128xi32>
    %57 = arith.cmpi eq, %54, %56 : vector<8x128xi32>
    %c0_i32_15 = arith.constant 0 : i32
    %58 = vector.broadcast %c0_i32_15 : i32 to vector<8x128xi32>
    %59 = arith.cmpi eq, %55, %58 : vector<8x128xi32>
    %60 = arith.andi %57, %59 : vector<8x128xi1>
    %c0_i32_16 = arith.constant 0 : i32
    %61 = vector.broadcast %c0_i32_16 : i32 to vector<8x128xi32>
    %62 = arith.cmpi eq, %54, %61 : vector<8x128xi32>
    %c1_i32_17 = arith.constant 1 : i32
    %63 = vector.broadcast %c1_i32_17 : i32 to vector<8x128xi32>
    %64 = arith.cmpi eq, %55, %63 : vector<8x128xi32>
    %65 = arith.andi %62, %64 : vector<8x128xi1>
    %cst_18 = arith.constant 0.000000e+00 : f32
    %66 = vector.broadcast %53 : f32 to vector<8x128xf32>
    %67 = vector.broadcast %cst_18 : f32 to vector<8x128xf32>
    %68 = arith.select %65, %66, %67 : vector<8x128xi1>, vector<8x128xf32>
    %69 = vector.broadcast %46 : f32 to vector<8x128xf32>
    %70 = arith.select %60, %69, %68 : vector<8x128xi1>, vector<8x128xf32>
    %c0_19 = arith.constant 0 : index
    %c0_20 = arith.constant 0 : index
    %c0_21 = arith.constant 0 : index
    %c0_22 = arith.constant 0 : index
    %71 = vector.load %arg4[%c0_19, %c0_20, %c0_21, %c0_22] : memref<1x1x8x128xf32, #tpu.memory_space<vmem>>, vector<1x1x8x128xf32>
    %72 = vector.shape_cast %71 : vector<1x1x8x128xf32> to vector<8x128xf32>
    %73 = vector.shape_cast %70 : vector<8x128xf32> to vector<1x1x8x128xf32>
    tpu.vector_store %arg4[%c0_19, %c0_20, %c0_21, %c0_22], %73 {strides = array<i32>} : memref<1x1x8x128xf32, #tpu.memory_space<vmem>>, vector<1x1x8x128xf32>,
    return
  }
  func.func @transform_0(%arg0: i32, %arg1: i32) -> (i32, i32, i32) {
    %c0_i32 = arith.constant 0 : i32
    %c0_i32_0 = arith.constant 0 : i32
    return %arg0, %c0_i32, %arg1 : i32, i32, i32
  }
  func.func @transform_1(%arg0: i32, %arg1: i32) -> (i32, i32, i32) {
    %c0_i32 = arith.constant 0 : i32
    %c0_i32_0 = arith.constant 0 : i32
    return %arg0, %c0_i32, %arg1 : i32, i32, i32
  }
  func.func @transform_2(%arg0: i32, %arg1: i32) -> (i32, i32, i32, i32) {
    %c0_i32 = arith.constant 0 : i32
    %c0_i32_0 = arith.constant 0 : i32
    %c0_i32_1 = arith.constant 0 : i32
    return %arg0, %arg1, %c0_i32, %c0_i32_0 : i32, i32, i32, i32
  }
}

</mosaic_0001>

<llo_original>
// kernel: tpu_custom_call.1
$region0: #{tpu_custom_call.1}
  #allocation0 [shape = 'u32[]', space=smem, size = 0x4, offset = 0x4, fixed_abs, tag = 'smem constant byte address 0x4 - core index']
  #allocation1 [shape = 'u32[144,128]{1,0:T(1,128)}', space=vmem, size = 0x12000, scoped, tag = 'internal scratch']
  %s0 = inlined_call_operand.hbm [shape: f32[2,1,256], index: 0, kind: input, shape index: {}]
  %s1 = inlined_call_operand.hbm [shape: f32[2,8,256], index: 1, kind: input, shape index: {}]
  %s2 = inlined_call_operand.hbm [shape: f32[2,1,8,128], index: 2, kind: output, shape index: {}]
  %s3 = sld [smem:[#allocation0]]
  $region49: #{tpu_custom_call.1} parent=0
    _
  %s5 = ssub.s32 1, %s3
  %s6 = scalar_select 0, %s5, %s3
  $region1: #{tpu_custom_call.1} parent=0
    #allocation2 [shape = 'u8[2048]{0}', space=vmem, size = 0x800, scoped, tag = 'input window, operand 0']
    #allocation3 [shape = 's32[2]{0}', space=sflag, size = 0x8, scoped, tag = 'scoped memory for tpu_custom_call.1']
    #allocation4 [shape = 's32[2]{0}', space=sflag, size = 0x8, scoped, tag = 'scoped memory for tpu_custom_call.1']
    #allocation5 [shape = 'u8[16384]{0}', space=vmem, size = 0x4000, scoped, tag = 'input window, operand 1']
    #allocation6 [shape = 's32[2]{0}', space=sflag, size = 0x8, scoped, tag = 'scoped memory for tpu_custom_call.1']
    #allocation7 [shape = 'u8[8192]{0}', space=vmem, size = 0x2000, scoped, tag = 'output window, operand 0']
    %7 = vsyncpa [#allocation3], 0
    %s8 = scalar_lea.sflag [#allocation3], 1
    %9 = vsyncpa %s8, 0
    %10 = vsyncpa [#allocation6], 0
    %s11 = scalar_lea.sflag [#allocation6], 1
    %12 = vsyncpa %s11, 0
    %13 = vsyncpa [#allocation4], 0
    %s14 = scalar_lea.sflag [#allocation4], 1
    %15 = vsyncpa %s14, 0
    loop: start=0, step=1, limit=4
    $region2: #{tpu_custom_call.1} parent=1 // loop_pre_header
      _
    $region3: #{tpu_custom_call.1} parent=1 // loop_header
      %s17 = sphi 0, %s21
      %p18 = scmp.ge.s32.totalorder %s17, 4
      %s24 = sphi 0, %s36
      %s25 = sphi 0, %s32
      %s26 = sphi 0, %s24
      %s27 = sphi 0, %s25
      %s28 = sphi 0, %s26
      %s29 = sphi 0, %s27
      %s41 = sphi 0, %s43
      %s44 = sphi 0, %s41
      %s45 = sphi 0, %s44
      %s61 = sphi 0, %s45
      %s69 = sphi 0, %s71
      %s72 = sphi 0, %s69
      %s73 = sphi 0, %s72
      %s89 = sphi 0, %s73
      %s97 = sphi 0, %s99
      %s100 = sphi 0, %s97
      %s101 = sphi 0, %s100
      %s117 = sphi 0, %s101
    $region4: #{tpu_custom_call.1} parent=1 // loop_header_branch
      %20 = sbr.rel (%p18) target = $region8
    $region5: #{tpu_custom_call.1} parent=1 // loop_body
      %s22 = ssub.s32 %s17, 1
      %s23 = ssub.s32 %s17, 2
      %s30 = sadd.s32 1, %s25
      %p31 = scmp.ge.s32.totalorder %s30, 1
      %s32 = scalar_select %p31, 0, %s30
      %s33 = sadd.s32 1, %s24
      %s34 = scalar_select %p31, %s33, %s24
      %p35 = scmp.ge.s32.totalorder %s34, 2
      %s36 = scalar_select %p35, 0, %s34
      %s37 = ssub.s32 %s24, %s36
      %s38 = ssub.s32 %s25, %s32
      %s39 = sor.u32 %s37, %s38
      %p40 = scmp.eq.s32.totalorder %s39, 0
      %s42 = sadd.s32 %s41, 1
      %s43 = scalar_select %p40, %s41, %s42
      %p46 = pneg %p40
      %p47 = scmp.eq.s32.totalorder %s17, 1
      %p48 = por %p46, %p47
      %p49 = scmp.ne.s32.totalorder %s41, %s44
      %p50 = scmp.eq.s32.totalorder %s17, 0
      %p51 = por %p49, %p50
      %p52 = scmp.ne.s32.totalorder %s41, %s44
      %p53 = scmp.eq.s32.totalorder %s22, 1
      %p54 = por %p52, %p53
      %p55 = scmp.ne.s32.totalorder %s44, %s45
      %p56 = scmp.eq.s32.totalorder %s22, 0
      %p57 = por %p55, %p56
      %p58 = scmp.ne.s32.totalorder %s44, %s45
      %p59 = scmp.eq.s32.totalorder %s23, 1
      %p60 = por %p58, %p59
      %p62 = scmp.ne.s32.totalorder %s45, %s61
      %p63 = scmp.eq.s32.totalorder %s23, 0
      %p64 = por %p62, %p63
      %s65 = ssub.s32 %s24, %s36
      %s66 = ssub.s32 %s25, %s32
      %s67 = sor.u32 %s65, %s66
      %p68 = scmp.eq.s32.totalorder %s67, 0
      %s70 = sadd.s32 %s69, 1
      %s71 = scalar_select %p68, %s69, %s70
      %p74 = pneg %p68
      %p75 = scmp.eq.s32.totalorder %s17, 1
      %p76 = por %p74, %p75
      %p77 = scmp.ne.s32.totalorder %s69, %s72
      %p78 = scmp.eq.s32.totalorder %s17, 0
      %p79 = por %p77, %p78
      %p80 = scmp.ne.s32.totalorder %s69, %s72
      %p81 = scmp.eq.s32.totalorder %s22, 1
      %p82 = por %p80, %p81
      %p83 = scmp.ne.s32.totalorder %s72, %s73
      %p84 = scmp.eq.s32.totalorder %s22, 0
      %p85 = por %p83, %p84
      %p86 = scmp.ne.s32.totalorder %s72, %s73
      %p87 = scmp.eq.s32.totalorder %s23, 1
      %p88 = por %p86, %p87
      %p90 = scmp.ne.s32.totalorder %s73, %s89
      %p91 = scmp.eq.s32.totalorder %s23, 0
      %p92 = por %p90, %p91
      %s93 = ssub.s32 %s24, %s36
      %s94 = ssub.s32 %s25, %s32
      %s95 = sor.u32 %s93, %s94
      %p96 = scmp.eq.s32.totalorder %s95, 0
      %s98 = sadd.s32 %s97, 1
      %s99 = scalar_select %p96, %s97, %s98
      %p102 = pneg %p96
      %p103 = scmp.eq.s32.totalorder %s17, 1
      %p104 = por %p102, %p103
      %p105 = scmp.ne.s32.totalorder %s97, %s100
      %p106 = scmp.eq.s32.totalorder %s17, 0
      %p107 = por %p105, %p106
      %p108 = scmp.ne.s32.totalorder %s97, %s100
      %p109 = scmp.eq.s32.totalorder %s22, 1
      %p110 = por %p108, %p109
      %p111 = scmp.ne.s32.totalorder %s100, %s101
      %p112 = scmp.eq.s32.totalorder %s22, 0
      %p113 = por %p111, %p112
      %p114 = scmp.ne.s32.totalorder %s100, %s101
      %p115 = scmp.eq.s32.totalorder %s23, 1
      %p116 = por %p114, %p115
      %p118 = scmp.ne.s32.totalorder %s101, %s117
      %p119 = scmp.eq.s32.totalorder %s23, 0
      %p120 = por %p118, %p119
      %p121 = scmp.le.s32.totalorder 1, %s17
      %p122 = scmp.lt.s32.totalorder %s17, 3
      %p123 = pnand %p121, %p122
      %p124 = pneg %p123
      // Predicated region
      $region9: #{tpu_custom_call.1} parent=5 // pred_check
        _
      $region10: #{tpu_custom_call.1} parent=5 // pred_check_branch
        %126 = sbr.rel (%p123) target = $region12
      $region11: #{tpu_custom_call.1} parent=5 // pred_region
        %s127 = ssub.s32 %s17, 1
      $region12: #{tpu_custom_call.1} parent=5 // pred_fallthru
        _
      %p128 = scmp.lt.s32.totalorder %s17, 2
      // Predicated region
      $region13: #{tpu_custom_call.1} parent=5 // pred_check
        %p129 = pneg %p128
      $region14: #{tpu_custom_call.1} parent=5 // pred_check_branch
        %131 = sbr.rel (%p129) target = $region16
      $region15: #{tpu_custom_call.1} parent=5 // pred_region
        // Predicated region
        $region17: #{tpu_custom_call.1} parent=15 // pred_check
          %p132 = pneg %p51
        $region18: #{tpu_custom_call.1} parent=15 // pred_check_branch
          %134 = sbr.rel (%p132) target = $region20
        $region19: #{tpu_custom_call.1} parent=15 // pred_region
          %s135 = sand.u32 %s41, 1
          %s136 = scalar_lea.sflag [#allocation3], %s135
          %s137 = sand.u32 %s41, 1
          %s138 = smul.addr %s137, 2
          %s139 = scalar_lea.vmem [#allocation2], %s138
          %s140 = smul.u32 2, %s25
          %s142 = ssub.s32 32, 32
          %143 = vsyncadd %s136, %s142
          %s144 = smul.addr %s24, 2
          %s145 = sadd.s32 %s140, %s144
          %s146 = smul.addr %s145, 16
          %s147 = scalar_lea.hbm %s0, %s146
          %s149 = sshll.u32 %s139, 4
          %s150 = int_to_ptr.vmem [resolvable:$true] %s149
          %152 = dma.hbm_to_vmem [thread:$0]  %s147, 32, %s150, %s136
        $region20: #{tpu_custom_call.1} parent=15 // pred_fallthru
          _
        // Predicated region
        $region21: #{tpu_custom_call.1} parent=15 // pred_check
          %p153 = pneg %p79
        $region22: #{tpu_custom_call.1} parent=15 // pred_check_branch
          %155 = sbr.rel (%p153) target = $region24
        $region23: #{tpu_custom_call.1} parent=15 // pred_region
          %s156 = sand.u32 %s69, 1
          %s157 = scalar_lea.sflag [#allocation6], %s156
          %s158 = sand.u32 %s69, 1
          %s159 = smul.addr %s158, 16
          %s160 = scalar_lea.vmem [#allocation5], %s159
          %s161 = smul.u32 2, %s25
          %s163 = ssub.s32 256, 256
          %164 = vsyncadd %s157, %s163
          %s165 = smul.addr %s24, 2
          %s166 = sadd.s32 %s161, %s165
          %s167 = smul.addr %s166, 128
          %s168 = scalar_lea.hbm %s1, %s167
          %s170 = sshll.u32 %s160, 4
          %s171 = int_to_ptr.vmem [resolvable:$true] %s170
          %173 = dma.hbm_to_vmem [thread:$0]  %s168, 256, %s171, %s157
        $region24: #{tpu_custom_call.1} parent=15 // pred_fallthru
          _
      $region16: #{tpu_custom_call.1} parent=5 // pred_fallthru
        _
      %p174 = scmp.le.s32.totalorder 1, %s17
      %p175 = scmp.lt.s32.totalorder %s17, 3
      %p176 = pnand %p174, %p175
      %p177 = pneg %p176
      // Predicated region
      $region25: #{tpu_custom_call.1} parent=5 // pred_check
        _
      $region26: #{tpu_custom_call.1} parent=5 // pred_check_branch
        %179 = sbr.rel (%p176) target = $region28
      $region27: #{tpu_custom_call.1} parent=5 // pred_region
        %s180 = ssub.s32 %s17, 1
        %s181 = sand.u32 %s44, 1
        %s182 = scalar_lea.sflag [#allocation3], %s181
        %s183 = sand.u32 %s44, 1
        %s184 = smul.addr %s183, 2
        %s185 = scalar_lea.vmem [#allocation2], %s184
        // Predicated region
        $region29: #{tpu_custom_call.1} parent=27 // pred_check
          %p186 = pneg %p57
        $region30: #{tpu_custom_call.1} parent=27 // pred_check_branch
          %188 = sbr.rel (%p186) target = $region32
        $region31: #{tpu_custom_call.1} parent=27 // pred_region
          %189 = dma.done %s182, 32
        $region32: #{tpu_custom_call.1} parent=27 // pred_fallthru
          _
        %s190 = sand.u32 %s72, 1
        %s191 = scalar_lea.sflag [#allocation6], %s190
        %s192 = sand.u32 %s72, 1
        %s193 = smul.addr %s192, 16
        %s194 = scalar_lea.vmem [#allocation5], %s193
        // Predicated region
        $region33: #{tpu_custom_call.1} parent=27 // pred_check
          %p195 = pneg %p85
        $region34: #{tpu_custom_call.1} parent=27 // pred_check_branch
          %197 = sbr.rel (%p195) target = $region36
        $region35: #{tpu_custom_call.1} parent=27 // pred_region
          %198 = dma.done %s191, 256
        $region36: #{tpu_custom_call.1} parent=27 // pred_fallthru
          _
        %s199 = sand.u32 %s44, 1
        %s200 = scalar_lea.sflag [#allocation3], %s199
        %s201 = sand.u32 %s44, 1
        %s202 = smul.addr %s201, 2
        %s203 = scalar_lea.vmem [#allocation2], %s202
        %p204 = pneg %p57
        %p205 = pneg %p54
        %s206 = sand.u32 %s72, 1
        %s207 = scalar_lea.sflag [#allocation6], %s206
        %s208 = sand.u32 %s72, 1
        %s209 = smul.addr %s208, 16
        %s210 = scalar_lea.vmem [#allocation5], %s209
        %p211 = pneg %p85
        %p212 = pneg %p82
        %p213 = pneg %p113
        %p214 = pneg %p110
        %s215 = sand.u32 %s100, 1
        %s216 = scalar_lea.sflag [#allocation4], %s215
        %s217 = sand.u32 %s100, 1
        %s218 = smul.addr %s217, 8
        %s219 = scalar_lea.vmem [#allocation7], %s218
        %s220 = smul.u32 2, %s27
        %s221 = smul.u32 2, %s27
        %s222 = smul.u32 %s27, 256
        %v223 = vlaneseq
        %v224 = vand.u32 %v223, 127
        %v225 = vadd.s32 %v224, 128
        %v226 = vstv %s222
        %v227 = vadd.s32 %v226, %v224
        %v228 = vadd.s32 %v226, %v225
        %vm229 = vcmp.lt.s32.totalorder %v227, 256
        %vm230 = vcmp.lt.s32.totalorder %v228, 256
        %v231 = vld [vmem:[%s194] sm:$0xff]
        %v232 = vld [vmem:[%s194 + $0x8] sm:$0xff]
        %v233 = vld [vmem:[%s185] sm:$0x3]
        %v234 = vrot.slane %v231, 7
        %v235 = vrot.slane %v232, 7
        %v236 = vsub.f32 %v231, %v234
        %v237 = vsub.f32 %v232, %v235
        %v238 = vand.u32 2147483647, %v236
        %v239 = vand.u32 2147483647, %v237
        %v240 = vrot.slane %v231, 6
        %v241 = vrot.slane %v232, 6
        %v242 = vsub.f32 %v231, %v240
        %v243 = vsub.f32 %v232, %v241
        %v244 = vand.u32 2147483647, %v242
        %v245 = vand.u32 2147483647, %v243
        %v246 = vadd.f32 %v238, %v244
        %v247 = vadd.f32 %v239, %v245
        %v248 = vrot.slane %v231, 5
        %v249 = vrot.slane %v232, 5
        %v250 = vsub.f32 %v231, %v248
        %v251 = vsub.f32 %v232, %v249
        %v252 = vand.u32 2147483647, %v250
        %v253 = vand.u32 2147483647, %v251
        %v254 = vadd.f32 %v246, %v252
        %v255 = vadd.f32 %v247, %v253
        %v256 = vrot.slane %v231, 4
        %v257 = vrot.slane %v232, 4
        %v258 = vsub.f32 %v231, %v256
        %v259 = vsub.f32 %v232, %v257
        %v260 = vand.u32 2147483647, %v258
        %v261 = vand.u32 2147483647, %v259
        %v262 = vmul.f32 %v260, 0.5
        %v263 = vmul.f32 %v261, 0.5
        %v264 = vadd.f32 %v254, %v262
        %v265 = vadd.f32 %v255, %v263
        %v267 = vlaneseq
        %v268 = vshrl.u32 %v267, 7
        %v269 = vsub.s32 0, %v268
        %v270 = vrot.slane %v233, %v269
        %v271 = vlaneseq
        %v272 = vshrl.u32 %v271, 7
        %v273 = vsub.s32 1, %v272
        %v274 = vrot.slane %v233, %v273
        %v277 = vsub.f32 %v231, %v270
        %v278 = vsub.f32 %v232, %v274
        %v279 = vand.u32 2147483647, %v277
        %v280 = vand.u32 2147483647, %v278
        %v281 = vmul.f32 %v264, 0.125
        %v282 = vmul.f32 %v265, 0.125
        %v283 = vsub.f32 %v279, %v281
        %v284 = vsub.f32 %v280, %v282
        %v285 = vrot.slane %v283, 4
        %v286 = vadd.f32 %v283, %v285
        %v287 = vrot.slane %v286, 2
        %v288 = vadd.f32 %v286, %v287
        %v289 = vrot.slane %v288, 1
        %v290 = vadd.f32 %v288, %v289
        %v291 = vrot.slane %v284, 4
        %v292 = vadd.f32 %v284, %v291
        %v293 = vrot.slane %v292, 2
        %v294 = vadd.f32 %v292, %v293
        %v295 = vrot.slane %v294, 1
        %v296 = vadd.f32 %v294, %v295
        %v297 = vmul.f32 %v290, 0.125
        %v298 = vmul.f32 %v296, 0.125
        %vm299 = vcmp.ne.f32.partialorder %v297, %v297
        %vm300 = vcmp.ne.f32.partialorder %v298, %v298
        %vm301 = vmxor %vm299, 1
        %vm302 = vmxor %vm300, 1
        %vm303 = vmand %vm229, %vm301
        %vm304 = vmand %vm230, %vm302
        %v305 = vsel %vm303, %v297, 0.0
        %v306 = vsel %vm304, %v298, 0.0
        %vm307 = vcmask 1040384
        %v308 = vsel %vm307, %v305, 0.0
        %v309 = vsel %vm307, %v306, 0.0
        %v310 = vadd.f32 %v308, %v309
        %311 = vadd.xlane.f32.xlu0 %v310
        %v312 = vpop.xlane.xlu0 %311
        %v313 = vrot.slane %v312, 4
        %v314 = vadd.f32 %v312, %v313
        %v315 = vrot.slane %v314, 2
        %v316 = vadd.f32 %v314, %v315
        %v317 = vrot.slane %v316, 1
        %v318 = vadd.f32 %v316, %v317
        %s319 = vtos %v318
        %s320 = sadd.f32 %s319, 0.0
        %v321 = vsel %vm303, 1, 0
        %v322 = vsel %vm304, 1, 0
        %v323 = vcvt.s32.f32 %v321
        %v324 = vcvt.s32.f32 %v322
        %v325 = vsel %vm307, %v323, 0.0
        %v326 = vsel %vm307, %v324, 0.0
        %v327 = vadd.f32 %v325, %v326
        %328 = vadd.xlane.f32.xlu0 %v327
        %v329 = vpop.xlane.xlu0 %328
        %v330 = vrot.slane %v329, 4
        %v331 = vadd.f32 %v329, %v330
        %v332 = vrot.slane %v331, 2
        %v333 = vadd.f32 %v331, %v332
        %v334 = vrot.slane %v333, 1
        %v335 = vadd.f32 %v333, %v334
        %s336 = vtos %v335
        %s337 = sadd.f32 %s336, 0.0
        %v338 = vlaneseq
        %v339 = vshrl.u32 %v338, 7
        %vm340 = vcmp.eq.s32.totalorder %v339, 0
        %vm341 = vcmp.eq.s32.totalorder %v224, 0
        %vm342 = vmand %vm340, %vm341
        %vm343 = vcmp.eq.s32.totalorder %v224, 1
        %vm344 = vmand %vm340, %vm343
        %v345 = vstv %s337
        %v346 = vsel %vm344, %v345, 0.0
        %v347 = vstv %s320
        %v348 = vsel %vm342, %v347, %v346
        %349 = vst [vmem:[%s219] sm:$0xff] %v348
        %s350 = sand.u32 %s100, 1
        %s351 = scalar_lea.sflag [#allocation4], %s350
        %s352 = sand.u32 %s100, 1
        %s353 = smul.addr %s352, 8
        %s354 = scalar_lea.vmem [#allocation7], %s353
        // Predicated region
        $region37: #{tpu_custom_call.1} parent=27 // pred_check
          %p355 = pneg %p110
        $region38: #{tpu_custom_call.1} parent=27 // pred_check_branch
          %357 = sbr.rel (%p355) target = $region40
        $region39: #{tpu_custom_call.1} parent=27 // pred_region
          %s359 = ssub.s32 128, 128
          %360 = vsyncadd %s351, %s359
          %s361 = sadd.s32 %s27, %s26
          %s362 = smul.addr %s361, 128
          %s363 = scalar_lea.hbm %s2, %s362
          %s365 = sshll.u32 %s354, 4
          %s366 = int_to_ptr.vmem [resolvable:$true] %s365
          %368 = dma.vmem_to_hbm [thread:$0]  %s366, 128, %s363, %s351
        $region40: #{tpu_custom_call.1} parent=27 // pred_fallthru
          _
      $region28: #{tpu_custom_call.1} parent=5 // pred_fallthru
        _
      %p369 = scmp.le.s32.totalorder 2, %s17
      // Predicated region
      $region41: #{tpu_custom_call.1} parent=5 // pred_check
        %p370 = pneg %p369
      $region42: #{tpu_custom_call.1} parent=5 // pred_check_branch
        %372 = sbr.rel (%p370) target = $region44
      $region43: #{tpu_custom_call.1} parent=5 // pred_region
        %s373 = ssub.s32 %s17, 2
        // Predicated region
        $region45: #{tpu_custom_call.1} parent=43 // pred_check
          %p374 = pneg %p116
        $region46: #{tpu_custom_call.1} parent=43 // pred_check_branch
          %376 = sbr.rel (%p374) target = $region48
        $region47: #{tpu_custom_call.1} parent=43 // pred_region
          %s377 = sand.u32 %s101, 1
          %s378 = scalar_lea.sflag [#allocation4], %s377
          %s379 = sand.u32 %s101, 1
          %s380 = smul.addr %s379, 8
          %s381 = scalar_lea.vmem [#allocation7], %s380
          %382 = dma.done %s378, 128
        $region48: #{tpu_custom_call.1} parent=43 // pred_fallthru
          _
      $region44: #{tpu_custom_call.1} parent=5 // pred_fallthru
        _
    $region6: #{tpu_custom_call.1} parent=1 // loop_footer
      %s21 = sadd.s32 1, %s17
    $region7: #{tpu_custom_call.1} parent=1 // loop_footer_branch
      %16 = sbr.rel target = $region3
    $region8: #{tpu_custom_call.1} parent=1 // loop_exit
      _
    %383 = vsyncpa [#allocation3], 1
    %s384 = scalar_lea.sflag [#allocation3], 1
    %385 = vsyncpa %s384, 1
    %386 = vsyncpa [#allocation6], 1
    %s387 = scalar_lea.sflag [#allocation6], 1
    %388 = vsyncpa %s387, 1
    %389 = vsyncpa [#allocation4], 1
    %s390 = scalar_lea.sflag [#allocation4], 1
    %391 = vsyncpa %s390, 1

</llo_original>
